<compile_context>
chip_gen: v6e
topology: v6e:2x2x1
jax: 0.10.0
libtpu: 0.0.40
codegen_flags: <defaults>
</compile_context>

<pallas_src>
import jax
import jax.numpy as jnp
from jax.experimental import pallas as pl
from jax.experimental.pallas import tpu as pltpu


def linear_kernel(x_ref, w_ref, b_ref, o_ref):
    # x_ref : [TM, F]   batch tile (streamed / double-buffered)
    # w_ref : [F, C]    pre-transposed weight, resident in VMEM
    # b_ref : [1, C]    bias row, resident in VMEM
    # o_ref : [TM, C]   output tile (no lane padding)
    acc = jnp.dot(x_ref[...], w_ref[...], preferred_element_type=jnp.float32)
    o_ref[...] = (acc + b_ref[...]).astype(o_ref.dtype)


def _round_up(x, m):
    return ((x + m - 1) // m) * m


def text_classification_forward(text, weight, bias, *, tm=4096):
    """text: [B, F] f32, weight: [C, F] f32, bias: [C] f32 -> [B, C] f32."""
    B, F = text.shape
    C = weight.shape[0]

    # One-time tiny wrapper transforms (100xC weight transpose, bias row).
    w_t = weight.T                      # [F, C]
    b_row = bias.reshape(1, C)          # [1, C]

    # Balanced batch tiling: sublane-align and bound padding waste to <= 7 rows.
    b_pad8 = _round_up(max(B, 1), 8)
    n_tiles = max(1, pl.cdiv(b_pad8, tm))
    tm_eff = _round_up(pl.cdiv(b_pad8, n_tiles), 8)
    b_padded = n_tiles * tm_eff

    x = text
    if b_padded != B:
        # Only materialize a padded copy when actually required.
        x = jnp.zeros((b_padded, F), text.dtype).at[:B, :].set(text)

    out = pl.pallas_call(
        linear_kernel,
        out_shape=jax.ShapeDtypeStruct((b_padded, C), jnp.float32),
        grid=(n_tiles,),
        in_specs=[
            pl.BlockSpec((tm_eff, F), lambda i: (i, 0)),   # x tiles stream
            pl.BlockSpec((F, C), lambda i: (0, 0)),        # weight resident
            pl.BlockSpec((1, C), lambda i: (0, 0)),        # bias resident
        ],
        out_specs=pl.BlockSpec((tm_eff, C), lambda i: (i, 0)),
        compiler_params=pltpu.CompilerParams(
            dimension_semantics=("parallel",)),            # shards batch over v7x's 2 TCs
    )(x, w_t, b_row)

    if b_padded != B:
        out = out[:B, :]
    return out


if __name__ == "__main__":
    num_classes = 4
    batch = 8
    in_features = 100

    key = jax.random.PRNGKey(0)
    k_x, k_w, k_b = jax.random.split(key, 3)

    # Deterministic parameter init (mimics PyTorch Linear uniform init range).
    bound = 1.0 / (in_features ** 0.5)
    weight = jax.random.uniform(k_w, (num_classes, in_features),
                                dtype=jnp.float32, minval=-bound, maxval=bound)
    bias = jax.random.uniform(k_b, (num_classes,),
                              dtype=jnp.float32, minval=-bound, maxval=bound)

    text = jax.random.normal(k_x, (batch, in_features), dtype=jnp.float32)

    out = text_classification_forward(text, weight, bias)
    out = jax.block_until_ready(out)

    # Reference check in plain JAX.
    ref = text @ weight.T + bias
    assert out.shape == (batch, num_classes)
    assert jnp.allclose(out, ref, atol=1e-5, rtol=1e-5)

    print("KERNEL_OK")
</pallas_src>

<mosaic_0001>
module attributes {stable_mosaic.version = 11 : i64} {
  func.func @linear_kernel(%arg0: i32, %arg1: memref<8x100xf32, #tpu.memory_space<vmem>>, %arg2: memref<100x4xf32, #tpu.memory_space<vmem>>, %arg3: memref<1x4xf32, #tpu.memory_space<vmem>>, %arg4: memref<8x4xf32, #tpu.memory_space<vmem>>) attributes {dimension_semantics = [#tpu.dimension_semantics<parallel>], iteration_bounds = array<i64: 1>, scalar_prefetch = 0 : i64, scratch_operands = 0 : i64, tpu.core_type = #tpu.core_type<tc>, window_params = [{transform_indices = @transform_0, window_bounds = array<i64: 8, 100>}, {pipeline_mode = #tpu.pipeline_mode<synchronous>, transform_indices = @transform_1, window_bounds = array<i64: 100, 4>}, {pipeline_mode = #tpu.pipeline_mode<synchronous>, transform_indices = @transform_2, window_bounds = array<i64: 1, 4>}, {transform_indices = @transform_3, window_bounds = array<i64: 8, 4>}]} {
    %c0 = arith.constant 0 : index
    %c0_0 = arith.constant 0 : index
    %0 = vector.load %arg1[%c0, %c0_0] : memref<8x100xf32, #tpu.memory_space<vmem>>, vector<8x100xf32>
    %c0_1 = arith.constant 0 : index
    %c0_2 = arith.constant 0 : index
    %1 = vector.load %arg2[%c0_1, %c0_2] : memref<100x4xf32, #tpu.memory_space<vmem>>, vector<100x4xf32>
    %cst = arith.constant dense<0.000000e+00> : vector<8x4xf32>
    %2 = tpu.matmul %0, %1, %cst {dimension_numbers = #tpu.dot_dimension_numbers<[1], [0], [0], [1], [0, 0, 1, 1], [], []>} : vector<8x100xf32>, vector<100x4xf32>, vector<8x4xf32> -> vector<8x4xf32>
    %c0_3 = arith.constant 0 : index
    %c0_4 = arith.constant 0 : index
    %3 = vector.load %arg3[%c0_3, %c0_4] : memref<1x4xf32, #tpu.memory_space<vmem>>, vector<1x4xf32>
    %4 = vector.broadcast %3 : vector<1x4xf32> to vector<8x4xf32>
    %5 = arith.addf %2, %4 : vector<8x4xf32>
    %c0_5 = arith.constant 0 : index
    %c0_6 = arith.constant 0 : index
    %6 = vector.load %arg4[%c0_5, %c0_6] : memref<8x4xf32, #tpu.memory_space<vmem>>, vector<8x4xf32>
    tpu.vector_store %arg4[%c0_5, %c0_6], %5 {strides = array<i32>} : memref<8x4xf32, #tpu.memory_space<vmem>>, vector<8x4xf32>,
    return
  }
  func.func @transform_0(%arg0: i32) -> (i32, i32) {
    %c0_i32 = arith.constant 0 : i32
    %c0_i32_0 = arith.constant 0 : i32
    return %arg0, %c0_i32 : i32, i32
  }
  func.func @transform_1(%arg0: i32) -> (i32, i32) {
    %c0_i32 = arith.constant 0 : i32
    %c0_i32_0 = arith.constant 0 : i32
    %c0_i32_1 = arith.constant 0 : i32
    return %c0_i32, %c0_i32_0 : i32, i32
  }
  func.func @transform_2(%arg0: i32) -> (i32, i32) {
    %c0_i32 = arith.constant 0 : i32
    %c0_i32_0 = arith.constant 0 : i32
    %c0_i32_1 = arith.constant 0 : i32
    return %c0_i32, %c0_i32_0 : i32, i32
  }
  func.func @transform_3(%arg0: i32) -> (i32, i32) {
    %c0_i32 = arith.constant 0 : i32
    %c0_i32_0 = arith.constant 0 : i32
    return %arg0, %c0_i32 : i32, i32
  }
}

</mosaic_0001>

<llo_original>
// kernel: tpu_custom_call.1
$region0: #{tpu_custom_call.1}
  #allocation0 [shape = 'u32[]', space=smem, size = 0x4, offset = 0x4, fixed_abs, tag = 'smem constant byte address 0x4 - core index']
  #allocation1 [shape = 'u32[144,128]{1,0:T(1,128)}', space=vmem, size = 0x12000, scoped, tag = 'internal scratch']
  %s0 = inlined_call_operand.vmem [shape: f32[8,100], index: 0, kind: input, shape index: {}]
  %s1 = inlined_call_operand.vmem [shape: f32[100,4], index: 1, kind: input, shape index: {}]
  %s2 = inlined_call_operand.vmem [shape: f32[1,4], index: 2, kind: input, shape index: {}]
  %s3 = inlined_call_operand.vmem [shape: f32[8,4], index: 3, kind: output, shape index: {}]
  %s4 = sld [smem:[#allocation0]]
  $region22: #{tpu_custom_call.1} parent=0
    _
  %s6 = ssub.s32 1, %s4
  %s7 = scalar_select 0, %s6, %s4
  // Predicated region
  $region2: #{tpu_custom_call.1} parent=0 // pred_check
    _
  $region3: #{tpu_custom_call.1} parent=0 // pred_check_branch
    %9 = sbr.rel (0) target = $region5
  $region4: #{tpu_custom_call.1} parent=0 // pred_region
    _
  $region5: #{tpu_custom_call.1} parent=0 // pred_fallthru
    _
  // Predicated region
  $region6: #{tpu_custom_call.1} parent=0 // pred_check
    _
  $region7: #{tpu_custom_call.1} parent=0 // pred_check_branch
    %11 = sbr.rel (0) target = $region9
  $region8: #{tpu_custom_call.1} parent=0 // pred_region
    _
  $region9: #{tpu_custom_call.1} parent=0 // pred_fallthru
    _
  // Predicated region
  $region10: #{tpu_custom_call.1} parent=0 // pred_check
    _
  $region11: #{tpu_custom_call.1} parent=0 // pred_check_branch
    %13 = sbr.rel (0) target = $region13
  $region12: #{tpu_custom_call.1} parent=0 // pred_region
    _
  $region13: #{tpu_custom_call.1} parent=0 // pred_fallthru
    _
  %v14 = vld [vmem:[%s0] sm:$0xff]
  %v15 = vld [vmem:[%s1] sm:$0xff]
  %v16 = vld [vmem:[%s1 + $0x8] sm:$0xff]
  %v17 = vld [vmem:[%s1 + $0x10] sm:$0xff]
  %v18 = vld [vmem:[%s1 + $0x18] sm:$0xff]
  %v19 = vld [vmem:[%s1 + $0x20] sm:$0xff]
  %v20 = vld [vmem:[%s1 + $0x28] sm:$0xff]
  %v21 = vld [vmem:[%s1 + $0x30] sm:$0xff]
  %v22 = vld [vmem:[%s1 + $0x38] sm:$0xff]
  %v23 = vld [vmem:[%s1 + $0x40] sm:$0xff]
  %v24 = vld [vmem:[%s1 + $0x48] sm:$0xff]
  %v25 = vld [vmem:[%s1 + $0x50] sm:$0xff]
  %v26 = vld [vmem:[%s1 + $0x58] sm:$0xff]
  %v27 = vld [vmem:[%s1 + $0x60] sm:$0xf]
  %v28 = vld [vmem:[%s2] sm:$0x1]
  %v30 = vlaneseq
  %v31 = vshrl.u32 %v30, 7
  %v32 = vsub.s32 0, %v31
  %v33 = vrot.slane %v28, %v32
  %vm35 = vcmask 818176
  %v37 = vsel %vm35, %v14, 0
  %vm39 = vcmask 1043456
  %v41 = vsel %vm39, %v27, 0
  %43 = vmatprep.subr.mxu0 0.0
  %44 = vmatpush1.msra.mxu0 0.0
  %45 = vmatprep.subr.mxu0 0.0
  %46 = vmatpush1.msra.mxu0 0.0
  %47 = vmatprep.subr.mxu0 0.0
  %48 = vmatpush1.msra.mxu0 0.0
  %49 = vmatprep.subr.mxu0 0.0
  %50 = vmatpush1.msra.mxu0 %v41
  %51 = vmatprep.subr.mxu0 0.0
  %52 = vmatpush1.msra.mxu0 %v26
  %53 = vmatprep.subr.mxu0 0.0
  %54 = vmatpush1.msra.mxu0 %v25
  %55 = vmatprep.subr.mxu0 0.0
  %56 = vmatpush1.msra.mxu0 %v24
  %57 = vmatprep.subr.mxu0 0.0
  %58 = vmatpush1.msra.mxu0 %v23
  %59 = vmatprep.subr.mxu0 0.0
  %60 = vmatpush1.msra.mxu0 %v22
  %61 = vmatprep.subr.mxu0 0.0
  %62 = vmatpush1.msra.mxu0 %v21
  %63 = vmatprep.subr.mxu0 0.0
  %64 = vmatpush1.msra.mxu0 %v20
  %65 = vmatprep.subr.mxu0 0.0
  %66 = vmatpush1.msra.mxu0 %v19
  %67 = vmatprep.subr.mxu0 0.0
  %68 = vmatpush1.msra.mxu0 %v18
  %69 = vmatprep.subr.mxu0 0.0
  %70 = vmatpush1.msra.mxu0 %v17
  %71 = vmatprep.subr.mxu0 0.0
  %72 = vmatpush1.msra.mxu0 %v16
  %73 = vmatprep.subr.mxu0 0.0
  %74 = vmatpush1.msra.mxu0 %v15
  %75 = vmatprep.subr.mxu0 0.0
  %76 = vmatpush2.msra.mxu0 0.0
  %77 = vmatprep.subr.mxu0 0.0
  %78 = vmatpush2.msra.mxu0 0.0
  %79 = vmatprep.subr.mxu0 0.0
  %80 = vmatpush2.msra.mxu0 0.0
  %81 = vmatprep.subr.mxu0 0.0
  %82 = vmatpush2.msra.mxu0 0.0
  %83 = vmatprep.subr.mxu0 0.0
  %84 = vmatpush2.msra.mxu0 0.0
  %85 = vmatprep.subr.mxu0 0.0
  %86 = vmatpush2.msra.mxu0 0.0
  %87 = vmatprep.subr.mxu0 0.0
  %88 = vmatpush2.msra.mxu0 0.0
  %89 = vmatprep.subr.mxu0 0.0
  %90 = vmatpush2.msra.mxu0 0.0
  %91 = vmatprep.subr.mxu0 0.0
  %92 = vmatpush2.msra.mxu0 0.0
  %93 = vmatprep.subr.mxu0 0.0
  %94 = vmatpush2.msra.mxu0 0.0
  %95 = vmatprep.subr.mxu0 0.0
  %96 = vmatpush2.msra.mxu0 0.0
  %97 = vmatprep.subr.mxu0 0.0
  %98 = vmatpush2.msra.mxu0 0.0
  %99 = vmatprep.subr.mxu0 0.0
  %100 = vmatpush2.msra.mxu0 0.0
  %101 = vmatprep.subr.mxu0 0.0
  %102 = vmatpush2.msra.mxu0 0.0
  %103 = vmatprep.subr.mxu0 0.0
  %104 = vmatpush2.msra.mxu0 0.0
  %105 = vmatprep.subr.mxu0 0.0
  %106 = vmatpush2.msra.mxu0 0.0
  %107 = vmatprep.mubr.f32.mxu0 0.0
  %108 = vmatmul.mubr.f32.gmra.mxu0 %v37
  %v109 = vpop.f32.mrf.mxu0
  %v110 = vadd.f32 %v33, %v109
  %v111 = vpop.f32.mrf.mxu0
  %112 = vdwg.mxu0
  %vm113 = vcmask 31744
  %114 = vst.msk [vmem:[%s3] sm:$0xff] %vm113, %v110
  // Predicated region
  $region14: #{tpu_custom_call.1} parent=0 // pred_check
    _
  $region15: #{tpu_custom_call.1} parent=0 // pred_check_branch
    %116 = sbr.rel (0) target = $region17
  $region16: #{tpu_custom_call.1} parent=0 // pred_region
    _
  $region17: #{tpu_custom_call.1} parent=0 // pred_fallthru
    _
  // Predicated region
  $region18: #{tpu_custom_call.1} parent=0 // pred_check
    _
  $region19: #{tpu_custom_call.1} parent=0 // pred_check_branch
    %118 = sbr.rel (0) target = $region21
  $region20: #{tpu_custom_call.1} parent=0 // pred_region
    _
  $region21: #{tpu_custom_call.1} parent=0 // pred_fallthru
    _

</llo_original>
